<compile_context>
chip_gen: v6e
topology: v6e:2x2x1
jax: 0.10.0
libtpu: 0.0.40
codegen_flags: <defaults>
</compile_context>

<pallas_src>
import jax
import jax.numpy as jnp
from jax.experimental import pallas as pl
from jax.experimental.pallas import tpu as pltpu

_VMEM = pltpu.MemorySpace.VMEM
_SMEM = pltpu.MemorySpace.SMEM


def _mlp_kernel(x_ref, w1_ref, b1_ref, w2t_ref, b2_ref, o_ref):
    # x_ref  : [TB, 3]  (VMEM)
    # w1_ref : [3, H]   (VMEM)   fc1 weight, stored [in, out]
    # b1_ref : [1, H]   (VMEM)
    # w2t_ref: [1, H]   (VMEM)   fc2 weight transposed (lane-major)
    # b2_ref : [1]      (SMEM)   fc2 bias scalar
    x = x_ref[...]
    w1 = w1_ref[...]

    # fc1 on the VPU: K=3 -> three broadcast FMAs (no MXU).
    h = (x[:, 0:1] * w1[0:1, :]
         + x[:, 1:2] * w1[1:2, :]
         + x[:, 2:3] * w1[2:3, :]
         + b1_ref[...])
    h = jnp.maximum(h, 0.0)

    # fc2 on VPU + XLU: elementwise multiply then lane reduction (N=1).
    out = jnp.sum(h * w2t_ref[...], axis=-1, keepdims=True) + b2_ref[0]
    o_ref[...] = out.astype(o_ref.dtype)


def hyperparam_net_forward(x, w1, b1, w2t, b2, *, block_b=1024):
    """x: [B, 3]; w1: [3, H]; b1: [1, H]; w2t: [1, H]; b2: [1] -> [B, 1]."""
    B, K = x.shape
    assert K == 3, x.shape

    if B <= block_b:
        # Single block, no grid: everything resident in VMEM, b2 in SMEM.
        return pl.pallas_call(
            _mlp_kernel,
            out_shape=jax.ShapeDtypeStruct((B, 1), x.dtype),
            in_specs=[
                pl.BlockSpec(memory_space=_VMEM),   # x
                pl.BlockSpec(memory_space=_VMEM),   # w1
                pl.BlockSpec(memory_space=_VMEM),   # b1
                pl.BlockSpec(memory_space=_VMEM),   # w2t
                pl.BlockSpec(memory_space=_SMEM),   # b2 scalar
            ],
            out_specs=pl.BlockSpec(memory_space=_VMEM),
        )(x, w1, b1, w2t, b2)

    # Batch-tiled path for realistic B: grid over the batch, weights stay
    # resident (index_map -> (0, 0)), batch axis marked "parallel" so v7x's
    # two TensorCores each take half the batch.
    nb = pl.cdiv(B, block_b)
    b_pad = nb * block_b
    xp = x if b_pad == B else jnp.pad(x, ((0, b_pad - B), (0, 0)))
    out = pl.pallas_call(
        _mlp_kernel,
        out_shape=jax.ShapeDtypeStruct((b_pad, 1), x.dtype),
        grid=(nb,),
        in_specs=[
            pl.BlockSpec((block_b, 3), lambda i: (i, 0)),
            pl.BlockSpec(w1.shape, lambda i: (0, 0)),
            pl.BlockSpec(b1.shape, lambda i: (0, 0)),
            pl.BlockSpec(w2t.shape, lambda i: (0, 0)),
            pl.BlockSpec(memory_space=_SMEM),
        ],
        out_specs=pl.BlockSpec((block_b, 1), lambda i: (i, 0)),
        compiler_params=pltpu.CompilerParams(
            dimension_semantics=("parallel",),
        ),
    )(xp, w1, b1, w2t, b2)
    return out[:B]


def _reference(x, w1, b1, w2t, b2):
    h = jnp.maximum(x @ w1 + b1, 0.0)
    return h @ w2t.T + b2


if __name__ == "__main__":
    hidden_size = 10
    batch = 8
    in_features = 3

    key = jax.random.PRNGKey(0)
    k_x, k_w1, k_b1, k_w2, k_b2, k_x2 = jax.random.split(key, 6)

    # Deterministic "synthetic checkpoint" parameters (PyTorch-Linear-like
    # uniform init ranges).  fc1 weight stored [in, out]; fc2 weight stored
    # transposed as a lane-major [1, hidden] row; fc2 bias as a scalar.
    bound1 = 1.0 / (in_features ** 0.5)
    bound2 = 1.0 / (hidden_size ** 0.5)
    x = jax.random.normal(k_x, (batch, in_features), dtype=jnp.float32)
    w1 = jax.random.uniform(k_w1, (in_features, hidden_size),
                            minval=-bound1, maxval=bound1, dtype=jnp.float32)
    b1 = jax.random.uniform(k_b1, (1, hidden_size),
                            minval=-bound1, maxval=bound1, dtype=jnp.float32)
    w2t = jax.random.uniform(k_w2, (1, hidden_size),
                             minval=-bound2, maxval=bound2, dtype=jnp.float32)
    b2 = jax.random.uniform(k_b2, (1,),
                            minval=-bound2, maxval=bound2, dtype=jnp.float32)

    # Small-batch (no-grid) path.
    out = hyperparam_net_forward(x, w1, b1, w2t, b2)
    out = jax.block_until_ready(out)
    ref = _reference(x, w1, b1, w2t, b2)
    assert out.shape == (batch, 1), out.shape
    assert jnp.allclose(out, ref, atol=1e-5, rtol=1e-5), "mismatch (no-grid)"

    # Batch-tiled path sanity check (grid over B, weights resident).
    big_batch = 512
    x_big = jax.random.normal(k_x2, (big_batch, in_features), dtype=jnp.float32)
    out_big = hyperparam_net_forward(x_big, w1, b1, w2t, b2, block_b=128)
    out_big = jax.block_until_ready(out_big)
    ref_big = _reference(x_big, w1, b1, w2t, b2)
    assert out_big.shape == (big_batch, 1), out_big.shape
    assert jnp.allclose(out_big, ref_big, atol=1e-5, rtol=1e-5), "mismatch (tiled)"

    print("KERNEL_OK")
</pallas_src>

<mosaic_0001>
module attributes {stable_mosaic.version = 11 : i64} {
  func.func @_mlp_kernel(%arg0: memref<8x3xf32, #tpu.memory_space<vmem>>, %arg1: memref<3x10xf32, #tpu.memory_space<vmem>>, %arg2: memref<1x10xf32, #tpu.memory_space<vmem>>, %arg3: memref<1x10xf32, #tpu.memory_space<vmem>>, %arg4: memref<1xf32, #tpu.memory_space<smem>>, %arg5: memref<8x1xf32, #tpu.memory_space<vmem>>) attributes {dimension_semantics = [], scalar_prefetch = 0 : i64, scratch_operands = 0 : i64, tpu.core_type = #tpu.core_type<tc>} {
    %c0 = arith.constant 0 : index
    %c0_0 = arith.constant 0 : index
    %0 = vector.load %arg0[%c0, %c0_0] : memref<8x3xf32, #tpu.memory_space<vmem>>, vector<8x3xf32>
    %c0_1 = arith.constant 0 : index
    %c0_2 = arith.constant 0 : index
    %1 = vector.load %arg1[%c0_1, %c0_2] : memref<3x10xf32, #tpu.memory_space<vmem>>, vector<3x10xf32>
    %2 = vector.extract_strided_slice %0 {offsets = [0, 0], sizes = [8, 1], strides = [1, 1]} : vector<8x3xf32> to vector<8x1xf32>
    %3 = vector.extract_strided_slice %1 {offsets = [0, 0], sizes = [1, 10], strides = [1, 1]} : vector<3x10xf32> to vector<1x10xf32>
    %4 = vector.broadcast %2 : vector<8x1xf32> to vector<8x10xf32>
    %5 = vector.broadcast %3 : vector<1x10xf32> to vector<8x10xf32>
    %6 = arith.mulf %4, %5 : vector<8x10xf32>
    %7 = vector.extract_strided_slice %0 {offsets = [0, 1], sizes = [8, 1], strides = [1, 1]} : vector<8x3xf32> to vector<8x1xf32>
    %8 = vector.extract_strided_slice %1 {offsets = [1, 0], sizes = [1, 10], strides = [1, 1]} : vector<3x10xf32> to vector<1x10xf32>
    %9 = vector.broadcast %7 : vector<8x1xf32> to vector<8x10xf32>
    %10 = vector.broadcast %8 : vector<1x10xf32> to vector<8x10xf32>
    %11 = arith.mulf %9, %10 : vector<8x10xf32>
    %12 = arith.addf %6, %11 : vector<8x10xf32>
    %13 = vector.extract_strided_slice %0 {offsets = [0, 2], sizes = [8, 1], strides = [1, 1]} : vector<8x3xf32> to vector<8x1xf32>
    %14 = vector.extract_strided_slice %1 {offsets = [2, 0], sizes = [1, 10], strides = [1, 1]} : vector<3x10xf32> to vector<1x10xf32>
    %15 = vector.broadcast %13 : vector<8x1xf32> to vector<8x10xf32>
    %16 = vector.broadcast %14 : vector<1x10xf32> to vector<8x10xf32>
    %17 = arith.mulf %15, %16 : vector<8x10xf32>
    %18 = arith.addf %12, %17 : vector<8x10xf32>
    %c0_3 = arith.constant 0 : index
    %c0_4 = arith.constant 0 : index
    %19 = vector.load %arg2[%c0_3, %c0_4] : memref<1x10xf32, #tpu.memory_space<vmem>>, vector<1x10xf32>
    %20 = vector.broadcast %19 : vector<1x10xf32> to vector<8x10xf32>
    %21 = arith.addf %18, %20 : vector<8x10xf32>
    %cst = arith.constant 0.000000e+00 : f32
    %22 = vector.broadcast %cst : f32 to vector<8x10xf32>
    %23 = arith.maximumf %21, %22 : vector<8x10xf32>
    %c0_5 = arith.constant 0 : index
    %c0_6 = arith.constant 0 : index
    %24 = vector.load %arg3[%c0_5, %c0_6] : memref<1x10xf32, #tpu.memory_space<vmem>>, vector<1x10xf32>
    %25 = vector.broadcast %24 : vector<1x10xf32> to vector<8x10xf32>
    %26 = arith.mulf %23, %25 : vector<8x10xf32>
    %cst_7 = arith.constant dense<0.000000e+00> : vector<8xf32>
    %27 = vector.multi_reduction <add>, %26, %cst_7 [1] : vector<8x10xf32> to vector<8xf32>
    %28 = vector.shape_cast %27 : vector<8xf32> to vector<8x1xf32>
    %c0_8 = arith.constant 0 : index
    %29 = memref.load %arg4[%c0_8] : memref<1xf32, #tpu.memory_space<smem>>
    %30 = vector.broadcast %29 : f32 to vector<8x1xf32>
    %31 = arith.addf %28, %30 : vector<8x1xf32>
    %c0_9 = arith.constant 0 : index
    %c0_10 = arith.constant 0 : index
    %32 = vector.load %arg5[%c0_9, %c0_10] : memref<8x1xf32, #tpu.memory_space<vmem>>, vector<8x1xf32>
    tpu.vector_store %arg5[%c0_9, %c0_10], %31 {strides = array<i32>} : memref<8x1xf32, #tpu.memory_space<vmem>>, vector<8x1xf32>,
    return
  }
}

</mosaic_0001>

<llo_original>
// kernel: tpu_custom_call.1
$region0: #{tpu_custom_call.1}
  #allocation0 [shape = 'u32[]', space=smem, size = 0x4, offset = 0x4, fixed_abs, tag = 'smem constant byte address 0x4 - core index']
  #allocation1 [shape = 'u32[144,128]{1,0:T(1,128)}', space=vmem, size = 0x12000, scoped, tag = 'internal scratch']
  #allocation2 [shape = 'f32[1]{0:T(128)S(6)}', space=smem, size = 0x200, scoped, tag = 'scoped memory for tpu_custom_call.1']
  %s0 = inlined_call_operand.vmem [shape: f32[8,3], index: 0, kind: input, shape index: {}]
  %s1 = inlined_call_operand.vmem [shape: f32[3,10], index: 1, kind: input, shape index: {}]
  %s2 = inlined_call_operand.vmem [shape: f32[1,10], index: 2, kind: input, shape index: {}]
  %s3 = inlined_call_operand.vmem [shape: f32[1,10], index: 3, kind: input, shape index: {}]
  %s4 = inlined_call_operand.<no memory space> [shape: f32[1], index: 4, kind: input, shape index: {}]
  %s5 = inlined_call_operand.vmem [shape: f32[8,1], index: 5, kind: output, shape index: {}]
  %s6 = sld [smem:[#allocation0]]
  $region30: #{tpu_custom_call.1} parent=0
    _
  %s8 = ssub.s32 1, %s6
  %s9 = scalar_select 0, %s8, %s6
  %10 = sst [smem:[#allocation2]] %s4
  // Predicated region
  $region2: #{tpu_custom_call.1} parent=0 // pred_check
    _
  $region3: #{tpu_custom_call.1} parent=0 // pred_check_branch
    %12 = sbr.rel (0) target = $region5
  $region4: #{tpu_custom_call.1} parent=0 // pred_region
    _
  $region5: #{tpu_custom_call.1} parent=0 // pred_fallthru
    _
  // Predicated region
  $region6: #{tpu_custom_call.1} parent=0 // pred_check
    _
  $region7: #{tpu_custom_call.1} parent=0 // pred_check_branch
    %14 = sbr.rel (0) target = $region9
  $region8: #{tpu_custom_call.1} parent=0 // pred_region
    _
  $region9: #{tpu_custom_call.1} parent=0 // pred_fallthru
    _
  // Predicated region
  $region10: #{tpu_custom_call.1} parent=0 // pred_check
    _
  $region11: #{tpu_custom_call.1} parent=0 // pred_check_branch
    %16 = sbr.rel (0) target = $region13
  $region12: #{tpu_custom_call.1} parent=0 // pred_region
    _
  $region13: #{tpu_custom_call.1} parent=0 // pred_fallthru
    _
  // Predicated region
  $region14: #{tpu_custom_call.1} parent=0 // pred_check
    _
  $region15: #{tpu_custom_call.1} parent=0 // pred_check_branch
    %18 = sbr.rel (0) target = $region17
  $region16: #{tpu_custom_call.1} parent=0 // pred_region
    _
  $region17: #{tpu_custom_call.1} parent=0 // pred_fallthru
    _
  // Predicated region
  $region18: #{tpu_custom_call.1} parent=0 // pred_check
    _
  $region19: #{tpu_custom_call.1} parent=0 // pred_check_branch
    %20 = sbr.rel (0) target = $region21
  $region20: #{tpu_custom_call.1} parent=0 // pred_region
    _
  $region21: #{tpu_custom_call.1} parent=0 // pred_fallthru
    _
  %v21 = vld [vmem:[%s0] sm:$0xff]
  %v22 = vld [vmem:[%s1] sm:$0x7]
  %24 = vset.pattern.permute.xlu0 0
  %25 = vperm.xlu0 %24, %v21
  %v26 = vpop.permute.xlu0 %25
  %v28 = vlaneseq
  %v29 = vshrl.u32 %v28, 7
  %v30 = vsub.s32 0, %v29
  %v31 = vrot.slane %v22, %v30
  %v32 = vmul.f32 %v26, %v31
  %33 = vset.pattern.permute.xlu0 1
  %34 = vperm.xlu0 %33, %v21
  %v35 = vpop.permute.xlu0 %34
  %v37 = vlaneseq
  %v38 = vshrl.u32 %v37, 7
  %v39 = vsub.s32 1, %v38
  %v40 = vrot.slane %v22, %v39
  %v41 = vmul.f32 %v35, %v40
  %v42 = vadd.f32 %v32, %v41
  %43 = vset.pattern.permute.xlu0 2
  %44 = vperm.xlu0 %43, %v21
  %v45 = vpop.permute.xlu0 %44
  %v47 = vlaneseq
  %v48 = vshrl.u32 %v47, 7
  %v49 = vsub.s32 2, %v48
  %v50 = vrot.slane %v22, %v49
  %v51 = vmul.f32 %v45, %v50
  %v52 = vadd.f32 %v42, %v51
  %v53 = vld [vmem:[%s2] sm:$0x1]
  %v55 = vlaneseq
  %v56 = vshrl.u32 %v55, 7
  %v57 = vsub.s32 0, %v56
  %v58 = vrot.slane %v53, %v57
  %v60 = vadd.f32 %v52, %v58
  %v61 = vmax.f32 %v60, 0.0
  %v62 = vld [vmem:[%s3] sm:$0x1]
  %v64 = vlaneseq
  %v65 = vshrl.u32 %v64, 7
  %v66 = vsub.s32 0, %v65
  %v67 = vrot.slane %v62, %v66
  %v69 = vmul.f32 %v61, %v67
  %vm70 = vcmask 80896
  %v71 = vsel %vm70, %v69, 0.0
  %72 = vadd.xlane.f32.xlu0 %v71
  %v73 = vpop.xlane.xlu0 %72
  %s74 = sld [smem:[#allocation2]]
  %v75 = vstv %s74
  %v76 = vadd.f32 %v73, %v75
  %vm77 = vcmask 7168
  %78 = vst.msk [vmem:[%s5] sm:$0xff] %vm77, %v76
  // Predicated region
  $region22: #{tpu_custom_call.1} parent=0 // pred_check
    _
  $region23: #{tpu_custom_call.1} parent=0 // pred_check_branch
    %80 = sbr.rel (0) target = $region25
  $region24: #{tpu_custom_call.1} parent=0 // pred_region
    _
  $region25: #{tpu_custom_call.1} parent=0 // pred_fallthru
    _
  // Predicated region
  $region26: #{tpu_custom_call.1} parent=0 // pred_check
    _
  $region27: #{tpu_custom_call.1} parent=0 // pred_check_branch
    %82 = sbr.rel (0) target = $region29
  $region28: #{tpu_custom_call.1} parent=0 // pred_region
    _
  $region29: #{tpu_custom_call.1} parent=0 // pred_fallthru
    _

</llo_original>
